<compile_context>
chip_gen: v5e
topology: v5e:2x2
jax: 0.10.0
libtpu: 0.0.40
codegen_flags: <defaults>
</compile_context>

<pallas_src>
import functools
import math

import jax
import jax.numpy as jnp
from jax.experimental import pallas as pl
from jax.experimental.pallas import tpu as pltpu

_LANE = 128


def _round_up(v, m):
    return ((v + m - 1) // m) * m


def _make_gcn_kernel(w_last: bool, has_bias: bool):
    """Build a kernel body for one (association-order, bias) configuration."""

    def kernel(*refs):
        if has_bias:
            adj_ref, x_ref, w_ref, b_ref, out_ref, acc_ref = refs
        else:
            adj_ref, x_ref, w_ref, out_ref, acc_ref = refs
            b_ref = None

        k = pl.program_id(1)

        @pl.when(k == 0)
        def _init():
            acc_ref[...] = jnp.zeros_like(acc_ref)

        if w_last:
            # Accumulate (adj @ x) across k; multiply by W once at the end.
            acc_ref[...] += jnp.dot(
                adj_ref[...], x_ref[...], preferred_element_type=jnp.float32)
        else:
            # support = x_tile @ W, then accumulate adj_tile @ support.
            support = jnp.dot(
                x_ref[...], w_ref[...], preferred_element_type=jnp.float32)
            acc_ref[...] += jnp.dot(
                adj_ref[...], support.astype(adj_ref.dtype),
                preferred_element_type=jnp.float32)

        @pl.when(k == pl.num_programs(1) - 1)
        def _finalize():
            if w_last:
                out = jnp.dot(
                    acc_ref[...], w_ref[...], preferred_element_type=jnp.float32)
            else:
                out = acc_ref[...]
            if has_bias:
                out = out + b_ref[...]
            out_ref[...] = out.astype(out_ref.dtype)

    return kernel


def graph_convolution(x, adj, weight, bias=None, *,
                      compute_dtype=jnp.bfloat16, tile_m=512, tile_k=512):
    """GCN layer forward: adj @ (x @ weight) (+ bias).

    x: [N, inFea], adj: [N, N] (dense), weight: [inFea, outFea],
    bias: [outFea] or None.  Returns [N, outFea] in x.dtype.
    """
    N, in_fea = x.shape
    assert adj.shape == (N, N)
    assert weight.shape[0] == in_fea
    out_fea = weight.shape[1]
    out_dtype = x.dtype
    has_bias = bias is not None

    # Choose association so the N-contraction carries the narrower feature side.
    w_last = in_fea <= out_fea            # True: (adj @ x) @ W
    in_pad = _round_up(in_fea, _LANE)
    out_pad = _round_up(out_fea, _LANE)
    inner_pad = in_pad if w_last else out_pad

    # Node-dimension tiling: row tile tm, reduction tile tk (multiples of 128,
    # clamped to the padded problem size).
    n128 = _round_up(N, _LANE)
    tm = _round_up(min(tile_m, n128), _LANE)
    tk = _round_up(min(tile_k, n128), _LANE)
    n_pad = _round_up(N, math.lcm(tm, tk))

    # Pad + cast operands.  adj/x stream in compute_dtype; weight keeps its own
    # dtype in the (adj @ x) @ W order (the finalize matmul is tiny).
    adj_p = jnp.pad(adj, ((0, n_pad - N), (0, n_pad - N))).astype(compute_dtype)
    x_p = jnp.pad(x, ((0, n_pad - N), (0, in_pad - in_fea))).astype(compute_dtype)
    w_dtype = weight.dtype if w_last else compute_dtype
    w_p = jnp.pad(weight,
                  ((0, in_pad - in_fea), (0, out_pad - out_fea))).astype(w_dtype)

    operands = [adj_p, x_p, w_p]
    in_specs = [
        pl.BlockSpec((tm, tk), lambda i, k: (i, k)),           # adj tile
        pl.BlockSpec((tk, in_pad), lambda i, k: (k, 0)),       # x reduction tile
        pl.BlockSpec((in_pad, out_pad), lambda i, k: (0, 0)),  # resident weight
    ]
    if has_bias:
        b_p = jnp.pad(bias.reshape(1, out_fea).astype(jnp.float32),
                      ((0, 0), (0, out_pad - out_fea)))
        operands.append(b_p)
        in_specs.append(pl.BlockSpec((1, out_pad), lambda i, k: (0, 0)))

    grid = (n_pad // tm, n_pad // tk)

    # VMEM budget: double-buffered inputs/output + f32 accumulator, with
    # headroom, clamped so we never exceed v7x's 64 MiB physical VMEM.
    cd = jnp.dtype(compute_dtype).itemsize
    est = (2 * tm * tk * cd
           + 2 * tk * in_pad * cd
           + 2 * in_pad * out_pad * jnp.dtype(w_dtype).itemsize
           + 2 * tm * out_pad * jnp.dtype(out_dtype).itemsize
           + tm * inner_pad * 4
           + (2 * out_pad * 4 if has_bias else 0))
    vmem_limit = int(min(max(2 * est, 32 << 20), 64 << 20))

    out_padded = pl.pallas_call(
        _make_gcn_kernel(w_last, has_bias),
        out_shape=jax.ShapeDtypeStruct((n_pad, out_pad), out_dtype),
        grid_spec=pltpu.PrefetchScalarGridSpec(
            num_scalar_prefetch=0,
            grid=grid,
            in_specs=in_specs,
            out_specs=pl.BlockSpec((tm, out_pad), lambda i, k: (i, 0)),
            scratch_shapes=[pltpu.VMEM((tm, inner_pad), jnp.float32)],
        ),
        compiler_params=pltpu.CompilerParams(
            dimension_semantics=("parallel", "arbitrary"),
            vmem_limit_bytes=vmem_limit,
        ),
    )(*operands)

    return out_padded[:N, :out_fea]


def init_params(key, in_fea, out_fea, bias=True):
    """Deterministic re-implementation of GraphConvolution.reset_parameters()."""
    stdv = 1.0 / math.sqrt(out_fea)
    kw, kb = jax.random.split(key)
    weight = jax.random.uniform(kw, (in_fea, out_fea), jnp.float32, -stdv, stdv)
    b = jax.random.uniform(kb, (out_fea,), jnp.float32, -stdv, stdv) if bias else None
    return weight, b


if __name__ == "__main__":
    # Small shapes consistent with the module: N graph nodes, inFea -> outFea.
    N, IN_FEA, OUT_FEA = 64, 16, 32

    key = jax.random.PRNGKey(0)
    k_x, k_adj, k_param = jax.random.split(key, 3)

    x = jax.random.normal(k_x, (N, IN_FEA), dtype=jnp.float32)

    # Synthetic symmetric row-normalized adjacency (dense; spmm == mm semantically).
    a = jax.random.uniform(k_adj, (N, N), jnp.float32)
    a = (a > 0.7).astype(jnp.float32)
    a = a + a.T + jnp.eye(N, dtype=jnp.float32)
    adj = a / jnp.sum(a, axis=1, keepdims=True)

    weight, bias = init_params(k_param, IN_FEA, OUT_FEA, bias=True)
    ref = adj @ (x @ weight) + bias[None, :]

    # 1) Exact-f32 path: tight check of the tiling + re-association.
    out_f32 = jax.block_until_ready(
        graph_convolution(x, adj, weight, bias, compute_dtype=jnp.float32))
    assert out_f32.shape == (N, OUT_FEA)
    assert jnp.allclose(out_f32, ref, atol=1e-4, rtol=1e-4), "f32 mismatch vs reference"

    # 2) Default bf16-streaming path (f32 accumulation): looser tolerance.
    out_bf = jax.block_until_ready(graph_convolution(x, adj, weight, bias))
    assert out_bf.shape == (N, OUT_FEA)
    assert jnp.allclose(out_bf, ref, atol=2e-2, rtol=2e-2), "bf16 mismatch vs reference"

    # 3) bias=None path (skips the bias DMA and the per-tile add).
    out_nb = jax.block_until_ready(
        graph_convolution(x, adj, weight, None, compute_dtype=jnp.float32))
    assert jnp.allclose(out_nb, adj @ (x @ weight), atol=1e-4, rtol=1e-4), "no-bias mismatch"

    # 4) inFea > outFea exercises the adj @ (x @ W) kernel order.
    w2, b2 = init_params(jax.random.PRNGKey(1), IN_FEA, 8, bias=True)
    out_b = jax.block_until_ready(
        graph_convolution(x, adj, w2, b2, compute_dtype=jnp.float32))
    assert jnp.allclose(out_b, adj @ (x @ w2) + b2[None, :],
                        atol=1e-4, rtol=1e-4), "order-B mismatch"

    print("KERNEL_OK")
</pallas_src>

<mosaic_0001>
module attributes {stable_mosaic.version = 11 : i64} {
  func.func @kernel(%arg0: i32, %arg1: i32, %arg2: memref<128x128xf32, #tpu.memory_space<vmem>>, %arg3: memref<128x128xf32, #tpu.memory_space<vmem>>, %arg4: memref<128x128xf32, #tpu.memory_space<vmem>>, %arg5: memref<1x128xf32, #tpu.memory_space<vmem>>, %arg6: memref<128x128xf32, #tpu.memory_space<vmem>>, %arg7: memref<128x128xf32, #tpu.memory_space<vmem>>) attributes {dimension_semantics = [#tpu.dimension_semantics<parallel>, #tpu.dimension_semantics<arbitrary>], iteration_bounds = array<i64: 1, 1>, scalar_prefetch = 0 : i64, scratch_operands = 1 : i64, tpu.core_type = #tpu.core_type<tc>, window_params = [{transform_indices = @transform_0, window_bounds = array<i64: 128, 128>}, {transform_indices = @transform_1, window_bounds = array<i64: 128, 128>}, {pipeline_mode = #tpu.pipeline_mode<synchronous>, transform_indices = @transform_2, window_bounds = array<i64: 128, 128>}, {pipeline_mode = #tpu.pipeline_mode<synchronous>, transform_indices = @transform_3, window_bounds = array<i64: 1, 128>}, {transform_indices = @transform_4, window_bounds = array<i64: 128, 128>}]} {
    %c0_i32 = arith.constant 0 : i32
    %0 = arith.cmpi eq, %arg1, %c0_i32 : i32
    %1 = arith.extui %0 : i1 to i32
    %c0_i32_0 = arith.constant 0 : i32
    %2 = arith.cmpi ne, %1, %c0_i32_0 : i32
    scf.if %2 {
      %cst_10 = arith.constant 0.000000e+00 : f32
      %12 = vector.broadcast %cst_10 : f32 to vector<128x128xf32>
      %c0_11 = arith.constant 0 : index
      %c0_12 = arith.constant 0 : index
      %13 = vector.load %arg7[%c0_11, %c0_12] : memref<128x128xf32, #tpu.memory_space<vmem>>, vector<128x128xf32>
      tpu.vector_store %arg7[%c0_11, %c0_12], %12 {strides = array<i32>} : memref<128x128xf32, #tpu.memory_space<vmem>>, vector<128x128xf32>,
    } else {
    }
    %c0 = arith.constant 0 : index
    %c0_1 = arith.constant 0 : index
    %3 = vector.load %arg7[%c0, %c0_1] : memref<128x128xf32, #tpu.memory_space<vmem>>, vector<128x128xf32>
    %c0_2 = arith.constant 0 : index
    %c0_3 = arith.constant 0 : index
    %4 = vector.load %arg2[%c0_2, %c0_3] : memref<128x128xf32, #tpu.memory_space<vmem>>, vector<128x128xf32>
    %c0_4 = arith.constant 0 : index
    %c0_5 = arith.constant 0 : index
    %5 = vector.load %arg3[%c0_4, %c0_5] : memref<128x128xf32, #tpu.memory_space<vmem>>, vector<128x128xf32>
    %cst = arith.constant dense<0.000000e+00> : vector<128x128xf32>
    %6 = tpu.matmul %4, %5, %cst {dimension_numbers = #tpu.dot_dimension_numbers<[1], [0], [0], [1], [0, 0, 1, 1], [], []>} : vector<128x128xf32>, vector<128x128xf32>, vector<128x128xf32> -> vector<128x128xf32>
    %7 = arith.addf %3, %6 : vector<128x128xf32>
    %c0_6 = arith.constant 0 : index
    %c0_7 = arith.constant 0 : index
    %8 = vector.load %arg7[%c0_6, %c0_7] : memref<128x128xf32, #tpu.memory_space<vmem>>, vector<128x128xf32>
    tpu.vector_store %arg7[%c0_6, %c0_7], %7 {strides = array<i32>} : memref<128x128xf32, #tpu.memory_space<vmem>>, vector<128x128xf32>,
    %c0_i32_8 = arith.constant 0 : i32
    %9 = arith.cmpi eq, %arg1, %c0_i32_8 : i32
    %10 = arith.extui %9 : i1 to i32
    %c0_i32_9 = arith.constant 0 : i32
    %11 = arith.cmpi ne, %10, %c0_i32_9 : i32
    scf.if %11 {
      %c0_10 = arith.constant 0 : index
      %c0_11 = arith.constant 0 : index
      %12 = vector.load %arg7[%c0_10, %c0_11] : memref<128x128xf32, #tpu.memory_space<vmem>>, vector<128x128xf32>
      %c0_12 = arith.constant 0 : index
      %c0_13 = arith.constant 0 : index
      %13 = vector.load %arg4[%c0_12, %c0_13] : memref<128x128xf32, #tpu.memory_space<vmem>>, vector<128x128xf32>
      %cst_14 = arith.constant dense<0.000000e+00> : vector<128x128xf32>
      %14 = tpu.matmul %12, %13, %cst_14 {dimension_numbers = #tpu.dot_dimension_numbers<[1], [0], [0], [1], [0, 0, 1, 1], [], []>} : vector<128x128xf32>, vector<128x128xf32>, vector<128x128xf32> -> vector<128x128xf32>
      %c0_15 = arith.constant 0 : index
      %c0_16 = arith.constant 0 : index
      %15 = vector.load %arg5[%c0_15, %c0_16] : memref<1x128xf32, #tpu.memory_space<vmem>>, vector<1x128xf32>
      %16 = vector.broadcast %15 : vector<1x128xf32> to vector<128x128xf32>
      %17 = arith.addf %14, %16 : vector<128x128xf32>
      %c0_17 = arith.constant 0 : index
      %c0_18 = arith.constant 0 : index
      %18 = vector.load %arg6[%c0_17, %c0_18] : memref<128x128xf32, #tpu.memory_space<vmem>>, vector<128x128xf32>
      tpu.vector_store %arg6[%c0_17, %c0_18], %17 {strides = array<i32>} : memref<128x128xf32, #tpu.memory_space<vmem>>, vector<128x128xf32>,
    } else {
    }
    return
  }
  func.func @transform_0(%arg0: i32, %arg1: i32) -> (i32, i32) {
    %c0_i32 = arith.constant 0 : i32
    return %arg0, %arg1 : i32, i32
  }
  func.func @transform_1(%arg0: i32, %arg1: i32) -> (i32, i32) {
    %c0_i32 = arith.constant 0 : i32
    %c0_i32_0 = arith.constant 0 : i32
    return %arg1, %c0_i32 : i32, i32
  }
  func.func @transform_2(%arg0: i32, %arg1: i32) -> (i32, i32) {
    %c0_i32 = arith.constant 0 : i32
    %c0_i32_0 = arith.constant 0 : i32
    %c0_i32_1 = arith.constant 0 : i32
    return %c0_i32, %c0_i32_0 : i32, i32
  }
  func.func @transform_3(%arg0: i32, %arg1: i32) -> (i32, i32) {
    %c0_i32 = arith.constant 0 : i32
    %c0_i32_0 = arith.constant 0 : i32
    %c0_i32_1 = arith.constant 0 : i32
    return %c0_i32, %c0_i32_0 : i32, i32
  }
  func.func @transform_4(%arg0: i32, %arg1: i32) -> (i32, i32) {
    %c0_i32 = arith.constant 0 : i32
    %c0_i32_0 = arith.constant 0 : i32
    return %arg0, %c0_i32 : i32, i32
  }
}

</mosaic_0001>

<llo_original>
// kernel: tpu_custom_call.1
$region0: #{tpu_custom_call.1}
  #allocation0 [shape = 'u32[]', space=smem, size = 0x4, offset = 0x4, fixed_abs, tag = 'smem constant byte address 0x4 - core index']
  #allocation1 [shape = 'u32[72,128]{1,0:T(1,128)}', space=vmem, size = 0x9000, scoped, tag = 'internal scratch']
  #allocation2 [shape = 'f32[128,128]{1,0:T(8,128)}', space=vmem, size = 0x10000, scoped, tag = 'scratch operand']
  %s0 = inlined_call_operand.hbm [shape: f32[128,128], index: 0, kind: input, shape index: {}]
  %s1 = inlined_call_operand.hbm [shape: f32[128,128], index: 1, kind: input, shape index: {}]
  %s2 = inlined_call_operand.hbm [shape: f32[128,128], index: 2, kind: input, shape index: {}]
  %s3 = inlined_call_operand.vmem [shape: f32[1,128], index: 3, kind: input, shape index: {}]
  %s4 = inlined_call_operand.hbm [shape: f32[128,128], index: 4, kind: output, shape index: {}]
  %s5 = sld [smem:[#allocation0]]
  $region46: #{tpu_custom_call.1} parent=0
    _
  %s7 = ssub.s32 1, %s5
  %s8 = scalar_select 0, %s7, %s5
  $region1: #{tpu_custom_call.1} parent=0
    #allocation3 [shape = 'u8[65536]{0}', space=vmem, size = 0x10000, scoped, tag = 'input window, operand 0, single buffered']
    #allocation4 [shape = 's32[1]{0}', space=sflag, size = 0x4, scoped, tag = 'scoped memory for tpu_custom_call.1']
    #allocation5 [shape = 's32[1]{0}', space=sflag, size = 0x4, scoped, tag = 'scoped memory for tpu_custom_call.1']
    #allocation6 [shape = 'u8[65536]{0}', space=vmem, size = 0x10000, scoped, tag = 'input window, operand 1, single buffered']
    #allocation7 [shape = 's32[1]{0}', space=sflag, size = 0x4, scoped, tag = 'scoped memory for tpu_custom_call.1']
    #allocation8 [shape = 'u8[65536]{0}', space=vmem, size = 0x10000, scoped, tag = 'input window, operand 2, single buffered']
    #allocation9 [shape = 'u8[65536]{0}', space=vmem, size = 0x10000, scoped, tag = 'output window, operand 0, single buffered']
    %9 = vsyncpa [#allocation4], 0
    %10 = vsyncpa [#allocation7], 0
    %11 = vsyncpa [#allocation5], 0
    // Predicated region
    $region2: #{tpu_custom_call.1} parent=1 // pred_check
      _
    $region3: #{tpu_custom_call.1} parent=1 // pred_check_branch
      %13 = sbr.rel (0) target = $region5
    $region4: #{tpu_custom_call.1} parent=1 // pred_region
      %15 = vsyncadd [#allocation4], 0
      %s16 = sshll.u32 %s0, 4
      %s17 = int_to_ptr.hbm [resolvable:$true] %s16
      %s18 = sshll.u32 [#allocation3], 4
      %s19 = int_to_ptr.vmem [resolvable:$true] %s18
      %24 = dma.hbm_to_vmem [thread:$0]  %s17, 2048, %s19, [#allocation4], 128, 128, 8
    $region5: #{tpu_custom_call.1} parent=1 // pred_fallthru
      _
    // Predicated region
    $region6: #{tpu_custom_call.1} parent=1 // pred_check
      _
    $region7: #{tpu_custom_call.1} parent=1 // pred_check_branch
      %26 = sbr.rel (0) target = $region9
    $region8: #{tpu_custom_call.1} parent=1 // pred_region
      %28 = vsyncadd [#allocation7], 0
      %s29 = sshll.u32 %s1, 4
      %s30 = int_to_ptr.hbm [resolvable:$true] %s29
      %s31 = sshll.u32 [#allocation6], 4
      %s32 = int_to_ptr.vmem [resolvable:$true] %s31
      %37 = dma.hbm_to_vmem [thread:$0]  %s30, 2048, %s32, [#allocation7], 128, 128, 8
    $region9: #{tpu_custom_call.1} parent=1 // pred_fallthru
      _
    // Predicated region
    $region10: #{tpu_custom_call.1} parent=1 // pred_check
      _
    $region11: #{tpu_custom_call.1} parent=1 // pred_check_branch
      %39 = sbr.rel (0) target = $region13
    $region12: #{tpu_custom_call.1} parent=1 // pred_region
      %41 = vsyncadd [#allocation7], 0
      %s42 = sshll.u32 %s2, 4
      %s43 = int_to_ptr.hbm [resolvable:$true] %s42
      %s44 = sshll.u32 [#allocation8], 4
      %s45 = int_to_ptr.vmem [resolvable:$true] %s44
      %50 = dma.hbm_to_vmem [thread:$0]  %s43, 2048, %s45, [#allocation7], 128, 128, 8
    $region13: #{tpu_custom_call.1} parent=1 // pred_fallthru
      _
    // Predicated region
    $region14: #{tpu_custom_call.1} parent=1 // pred_check
      _
    $region15: #{tpu_custom_call.1} parent=1 // pred_check_branch
      %52 = sbr.rel (0) target = $region17
    $region16: #{tpu_custom_call.1} parent=1 // pred_region
      _
    $region17: #{tpu_custom_call.1} parent=1 // pred_fallthru
      _
    // Predicated region
    $region18: #{tpu_custom_call.1} parent=1 // pred_check
      _
    $region19: #{tpu_custom_call.1} parent=1 // pred_check_branch
      %54 = sbr.rel (0) target = $region21
    $region20: #{tpu_custom_call.1} parent=1 // pred_region
      %56 = dma.done [#allocation4], 2048
    $region21: #{tpu_custom_call.1} parent=1 // pred_fallthru
      _
    // Predicated region
    $region22: #{tpu_custom_call.1} parent=1 // pred_check
      _
    $region23: #{tpu_custom_call.1} parent=1 // pred_check_branch
      %58 = sbr.rel (0) target = $region25
    $region24: #{tpu_custom_call.1} parent=1 // pred_region
      %60 = dma.done [#allocation7], 2048
    $region25: #{tpu_custom_call.1} parent=1 // pred_fallthru
      _
    // Predicated region
    $region26: #{tpu_custom_call.1} parent=1 // pred_check
      _
    $region27: #{tpu_custom_call.1} parent=1 // pred_check_branch
      %62 = sbr.rel (0) target = $region29
    $region28: #{tpu_custom_call.1} parent=1 // pred_region
      %64 = dma.done [#allocation7], 2048
    $region29: #{tpu_custom_call.1} parent=1 // pred_fallthru
      _
    %p65 = scmp.eq.s32.totalorder 0, 0
    // Predicated region
    $region30: #{tpu_custom_call.1} parent=1 // pred_check
      %p66 = pneg %p65
    $region31: #{tpu_custom_call.1} parent=1 // pred_check_branch
      %68 = sbr.rel (%p66) target = $region33
    $region32: #{tpu_custom_call.1} parent=1 // pred_region
      %69 = vst [vmem:[#allocation2] sm:$0xff] 0.0
      %70 = vst [vmem:[#allocation2 + $0x8] sm:$0xff] 0.0
      %71 = vst [vmem:[#allocation2 + $0x10] sm:$0xff] 0.0
      %72 = vst [vmem:[#allocation2 + $0x18] sm:$0xff] 0.0
      %73 = vst [vmem:[#allocation2 + $0x20] sm:$0xff] 0.0
      %74 = vst [vmem:[#allocation2 + $0x28] sm:$0xff] 0.0
      %75 = vst [vmem:[#allocation2 + $0x30] sm:$0xff] 0.0
      %76 = vst [vmem:[#allocation2 + $0x38] sm:$0xff] 0.0
      %77 = vst [vmem:[#allocation2 + $0x40] sm:$0xff] 0.0
      %78 = vst [vmem:[#allocation2 + $0x48] sm:$0xff] 0.0
      %79 = vst [vmem:[#allocation2 + $0x50] sm:$0xff] 0.0
      %80 = vst [vmem:[#allocation2 + $0x58] sm:$0xff] 0.0
      %81 = vst [vmem:[#allocation2 + $0x60] sm:$0xff] 0.0
      %82 = vst [vmem:[#allocation2 + $0x68] sm:$0xff] 0.0
      %83 = vst [vmem:[#allocation2 + $0x70] sm:$0xff] 0.0
      %84 = vst [vmem:[#allocation2 + $0x78] sm:$0xff] 0.0
    $region33: #{tpu_custom_call.1} parent=1 // pred_fallthru
      _
    %v85 = vld [vmem:[#allocation2] sm:$0xff]
    %v86 = vld [vmem:[#allocation2 + $0x8] sm:$0xff]
    %v87 = vld [vmem:[#allocation2 + $0x10] sm:$0xff]
    %v88 = vld [vmem:[#allocation2 + $0x18] sm:$0xff]
    %v89 = vld [vmem:[#allocation2 + $0x20] sm:$0xff]
    %v90 = vld [vmem:[#allocation2 + $0x28] sm:$0xff]
    %v91 = vld [vmem:[#allocation2 + $0x30] sm:$0xff]
    %v92 = vld [vmem:[#allocation2 + $0x38] sm:$0xff]
    %v93 = vld [vmem:[#allocation2 + $0x40] sm:$0xff]
    %v94 = vld [vmem:[#allocation2 + $0x48] sm:$0xff]
    %v95 = vld [vmem:[#allocation2 + $0x50] sm:$0xff]
    %v96 = vld [vmem:[#allocation2 + $0x58] sm:$0xff]
    %v97 = vld [vmem:[#allocation2 + $0x60] sm:$0xff]
    %v98 = vld [vmem:[#allocation2 + $0x68] sm:$0xff]
    %v99 = vld [vmem:[#allocation2 + $0x70] sm:$0xff]
    %v100 = vld [vmem:[#allocation2 + $0x78] sm:$0xff]
    %v101 = vld [vmem:[#allocation3] sm:$0xff]
    %v102 = vld [vmem:[#allocation3 + $0x8] sm:$0xff]
    %v103 = vld [vmem:[#allocation3 + $0x10] sm:$0xff]
    %v104 = vld [vmem:[#allocation3 + $0x18] sm:$0xff]
    %v105 = vld [vmem:[#allocation3 + $0x20] sm:$0xff]
    %v106 = vld [vmem:[#allocation3 + $0x28] sm:$0xff]
    %v107 = vld [vmem:[#allocation3 + $0x30] sm:$0xff]
    %v108 = vld [vmem:[#allocation3 + $0x38] sm:$0xff]
    %v109 = vld [vmem:[#allocation3 + $0x40] sm:$0xff]
    %v110 = vld [vmem:[#allocation3 + $0x48] sm:$0xff]
    %v111 = vld [vmem:[#allocation3 + $0x50] sm:$0xff]
    %v112 = vld [vmem:[#allocation3 + $0x58] sm:$0xff]
    %v113 = vld [vmem:[#allocation3 + $0x60] sm:$0xff]
    %v114 = vld [vmem:[#allocation3 + $0x68] sm:$0xff]
    %v115 = vld [vmem:[#allocation3 + $0x70] sm:$0xff]
    %v116 = vld [vmem:[#allocation3 + $0x78] sm:$0xff]
    %v117 = vld [vmem:[#allocation6] sm:$0xff]
    %v118 = vld [vmem:[#allocation6 + $0x8] sm:$0xff]
    %v119 = vld [vmem:[#allocation6 + $0x10] sm:$0xff]
    %v120 = vld [vmem:[#allocation6 + $0x18] sm:$0xff]
    %v121 = vld [vmem:[#allocation6 + $0x20] sm:$0xff]
    %v122 = vld [vmem:[#allocation6 + $0x28] sm:$0xff]
    %v123 = vld [vmem:[#allocation6 + $0x30] sm:$0xff]
    %v124 = vld [vmem:[#allocation6 + $0x38] sm:$0xff]
    %v125 = vld [vmem:[#allocation6 + $0x40] sm:$0xff]
    %v126 = vld [vmem:[#allocation6 + $0x48] sm:$0xff]
    %v127 = vld [vmem:[#allocation6 + $0x50] sm:$0xff]
    %v128 = vld [vmem:[#allocation6 + $0x58] sm:$0xff]
    %v129 = vld [vmem:[#allocation6 + $0x60] sm:$0xff]
    %v130 = vld [vmem:[#allocation6 + $0x68] sm:$0xff]
    %v131 = vld [vmem:[#allocation6 + $0x70] sm:$0xff]
    %v132 = vld [vmem:[#allocation6 + $0x78] sm:$0xff]
    %133 = vmatpush.msra.mxu0 %v132
    %134 = vmatpush.msra.mxu0 %v131
    %135 = vmatpush.msra.mxu0 %v130
    %136 = vmatpush.msra.mxu0 %v129
    %137 = vmatpush.msra.mxu0 %v128
    %138 = vmatpush.msra.mxu0 %v127
    %139 = vmatpush.msra.mxu0 %v126
    %140 = vmatpush.msra.mxu0 %v125
    %141 = vmatpush.msra.mxu0 %v124
    %142 = vmatpush.msra.mxu0 %v123
    %143 = vmatpush.msra.mxu0 %v122
    %144 = vmatpush.msra.mxu0 %v121
    %145 = vmatpush.msra.mxu0 %v120
    %146 = vmatpush.msra.mxu0 %v119
    %147 = vmatpush.msra.mxu0 %v118
    %148 = vmatpush.msra.mxu0 %v117
    %149 = vmatmul.f32.gmra.mxu0 %v101
    %v150 = vpop.f32.mrf.mxu0
    %v151 = vadd.f32 0.0, %v150
    %152 = vmatmul.f32.gmra.mxu0 %v102
    %v153 = vpop.f32.mrf.mxu0
    %v154 = vadd.f32 0.0, %v153
    %155 = vmatmul.f32.gmra.mxu0 %v103
    %v156 = vpop.f32.mrf.mxu0
    %v157 = vadd.f32 0.0, %v156
    %158 = vmatmul.f32.gmra.mxu0 %v104
    %v159 = vpop.f32.mrf.mxu0
    %v160 = vadd.f32 0.0, %v159
    %161 = vmatmul.f32.gmra.mxu0 %v105
    %v162 = vpop.f32.mrf.mxu0
    %v163 = vadd.f32 0.0, %v162
    %164 = vmatmul.f32.gmra.mxu0 %v106
    %v165 = vpop.f32.mrf.mxu0
    %v166 = vadd.f32 0.0, %v165
    %167 = vmatmul.f32.gmra.mxu0 %v107
    %v168 = vpop.f32.mrf.mxu0
    %v169 = vadd.f32 0.0, %v168
    %170 = vmatmul.f32.gmra.mxu0 %v108
    %v171 = vpop.f32.mrf.mxu0
    %v172 = vadd.f32 0.0, %v171
    %173 = vmatmul.f32.gmra.mxu0 %v109
    %v174 = vpop.f32.mrf.mxu0
    %v175 = vadd.f32 0.0, %v174
    %176 = vmatmul.f32.gmra.mxu0 %v110
    %v177 = vpop.f32.mrf.mxu0
    %v178 = vadd.f32 0.0, %v177
    %179 = vmatmul.f32.gmra.mxu0 %v111
    %v180 = vpop.f32.mrf.mxu0
    %v181 = vadd.f32 0.0, %v180
    %182 = vmatmul.f32.gmra.mxu0 %v112
    %v183 = vpop.f32.mrf.mxu0
    %v184 = vadd.f32 0.0, %v183
    %185 = vmatmul.f32.gmra.mxu0 %v113
    %v186 = vpop.f32.mrf.mxu0
    %v187 = vadd.f32 0.0, %v186
    %188 = vmatmul.f32.gmra.mxu0 %v114
    %v189 = vpop.f32.mrf.mxu0
    %v190 = vadd.f32 0.0, %v189
    %191 = vmatmul.f32.gmra.mxu0 %v115
    %v192 = vpop.f32.mrf.mxu0
    %v193 = vadd.f32 0.0, %v192
    %194 = vmatmul.f32.gmra.mxu0 %v116
    %v195 = vpop.f32.mrf.mxu0
    %v196 = vadd.f32 0.0, %v195
    %197 = vdwg.mxu0
    %v198 = vadd.f32 %v85, %v151
    %v199 = vadd.f32 %v86, %v154
    %v200 = vadd.f32 %v87, %v157
    %v201 = vadd.f32 %v88, %v160
    %v202 = vadd.f32 %v89, %v163
    %v203 = vadd.f32 %v90, %v166
    %v204 = vadd.f32 %v91, %v169
    %v205 = vadd.f32 %v92, %v172
    %v206 = vadd.f32 %v93, %v175
    %v207 = vadd.f32 %v94, %v178
    %v208 = vadd.f32 %v95, %v181
    %v209 = vadd.f32 %v96, %v184
    %v210 = vadd.f32 %v97, %v187
    %v211 = vadd.f32 %v98, %v190
    %v212 = vadd.f32 %v99, %v193
    %v213 = vadd.f32 %v100, %v196
    %214 = vst [vmem:[#allocation2] sm:$0xff] %v198
    %215 = vst [vmem:[#allocation2 + $0x8] sm:$0xff] %v199
    %216 = vst [vmem:[#allocation2 + $0x10] sm:$0xff] %v200
    %217 = vst [vmem:[#allocation2 + $0x18] sm:$0xff] %v201
    %218 = vst [vmem:[#allocation2 + $0x20] sm:$0xff] %v202
    %219 = vst [vmem:[#allocation2 + $0x28] sm:$0xff] %v203
    %220 = vst [vmem:[#allocation2 + $0x30] sm:$0xff] %v204
    %221 = vst [vmem:[#allocation2 + $0x38] sm:$0xff] %v205
    %222 = vst [vmem:[#allocation2 + $0x40] sm:$0xff] %v206
    %223 = vst [vmem:[#allocation2 + $0x48] sm:$0xff] %v207
    %224 = vst [vmem:[#allocation2 + $0x50] sm:$0xff] %v208
    %225 = vst [vmem:[#allocation2 + $0x58] sm:$0xff] %v209
    %226 = vst [vmem:[#allocation2 + $0x60] sm:$0xff] %v210
    %227 = vst [vmem:[#allocation2 + $0x68] sm:$0xff] %v211
    %228 = vst [vmem:[#allocation2 + $0x70] sm:$0xff] %v212
    %229 = vst [vmem:[#allocation2 + $0x78] sm:$0xff] %v213
    // Predicated region
    $region34: #{tpu_custom_call.1} parent=1 // pred_check
      %p230 = pneg %p65
    $region35: #{tpu_custom_call.1} parent=1 // pred_check_branch
      %232 = sbr.rel (%p230) target = $region37
    $region36: #{tpu_custom_call.1} parent=1 // pred_region
      %v233 = vld [vmem:[#allocation2] sm:$0xff]
      %v234 = vld [vmem:[#allocation2 + $0x8] sm:$0xff]
      %v235 = vld [vmem:[#allocation2 + $0x10] sm:$0xff]
      %v236 = vld [vmem:[#allocation2 + $0x18] sm:$0xff]
      %v237 = vld [vmem:[#allocation2 + $0x20] sm:$0xff]
      %v238 = vld [vmem:[#allocation2 + $0x28] sm:$0xff]
      %v239 = vld [vmem:[#allocation2 + $0x30] sm:$0xff]
      %v240 = vld [vmem:[#allocation2 + $0x38] sm:$0xff]
      %v241 = vld [vmem:[#allocation2 + $0x40] sm:$0xff]
      %v242 = vld [vmem:[#allocation2 + $0x48] sm:$0xff]
      %v243 = vld [vmem:[#allocation2 + $0x50] sm:$0xff]
      %v244 = vld [vmem:[#allocation2 + $0x58] sm:$0xff]
      %v245 = vld [vmem:[#allocation2 + $0x60] sm:$0xff]
      %v246 = vld [vmem:[#allocation2 + $0x68] sm:$0xff]
      %v247 = vld [vmem:[#allocation2 + $0x70] sm:$0xff]
      %v248 = vld [vmem:[#allocation2 + $0x78] sm:$0xff]
      %v249 = vld [vmem:[#allocation8] sm:$0xff]
      %v250 = vld [vmem:[#allocation8 + $0x8] sm:$0xff]
      %v251 = vld [vmem:[#allocation8 + $0x10] sm:$0xff]
      %v252 = vld [vmem:[#allocation8 + $0x18] sm:$0xff]
      %v253 = vld [vmem:[#allocation8 + $0x20] sm:$0xff]
      %v254 = vld [vmem:[#allocation8 + $0x28] sm:$0xff]
      %v255 = vld [vmem:[#allocation8 + $0x30] sm:$0xff]
      %v256 = vld [vmem:[#allocation8 + $0x38] sm:$0xff]
      %v257 = vld [vmem:[#allocation8 + $0x40] sm:$0xff]
      %v258 = vld [vmem:[#allocation8 + $0x48] sm:$0xff]
      %v259 = vld [vmem:[#allocation8 + $0x50] sm:$0xff]
      %v260 = vld [vmem:[#allocation8 + $0x58] sm:$0xff]
      %v261 = vld [vmem:[#allocation8 + $0x60] sm:$0xff]
      %v262 = vld [vmem:[#allocation8 + $0x68] sm:$0xff]
      %v263 = vld [vmem:[#allocation8 + $0x70] sm:$0xff]
      %v264 = vld [vmem:[#allocation8 + $0x78] sm:$0xff]
      %v265 = vld [vmem:[%s3] sm:$0x1]
      %v267 = vperm.slane %v265, 0
      %269 = vmatpush.msra.mxu0 %v264
      %270 = vmatpush.msra.mxu0 %v263
      %271 = vmatpush.msra.mxu0 %v262
      %272 = vmatpush.msra.mxu0 %v261
      %273 = vmatpush.msra.mxu0 %v260
      %274 = vmatpush.msra.mxu0 %v259
      %275 = vmatpush.msra.mxu0 %v258
      %276 = vmatpush.msra.mxu0 %v257
      %277 = vmatpush.msra.mxu0 %v256
      %278 = vmatpush.msra.mxu0 %v255
      %279 = vmatpush.msra.mxu0 %v254
      %280 = vmatpush.msra.mxu0 %v253
      %281 = vmatpush.msra.mxu0 %v252
      %282 = vmatpush.msra.mxu0 %v251
      %283 = vmatpush.msra.mxu0 %v250
      %284 = vmatpush.msra.mxu0 %v249
      %285 = vmatmul.f32.gmra.mxu0 %v233
      %v286 = vpop.f32.mrf.mxu0
      %v287 = vadd.f32 %v267, %v286
      %288 = vmatmul.f32.gmra.mxu0 %v234
      %v289 = vpop.f32.mrf.mxu0
      %v290 = vadd.f32 %v267, %v289
      %291 = vmatmul.f32.gmra.mxu0 %v235
      %v292 = vpop.f32.mrf.mxu0
      %v293 = vadd.f32 %v267, %v292
      %294 = vmatmul.f32.gmra.mxu0 %v236
      %v295 = vpop.f32.mrf.mxu0
      %v296 = vadd.f32 %v267, %v295
      %297 = vmatmul.f32.gmra.mxu0 %v237
      %v298 = vpop.f32.mrf.mxu0
      %v299 = vadd.f32 %v267, %v298
      %300 = vmatmul.f32.gmra.mxu0 %v238
      %v301 = vpop.f32.mrf.mxu0
      %v302 = vadd.f32 %v267, %v301
      %303 = vmatmul.f32.gmra.mxu0 %v239
      %v304 = vpop.f32.mrf.mxu0
      %v305 = vadd.f32 %v267, %v304
      %306 = vmatmul.f32.gmra.mxu0 %v240
      %v307 = vpop.f32.mrf.mxu0
      %v308 = vadd.f32 %v267, %v307
      %309 = vmatmul.f32.gmra.mxu0 %v241
      %v310 = vpop.f32.mrf.mxu0
      %v311 = vadd.f32 %v267, %v310
      %312 = vmatmul.f32.gmra.mxu0 %v242
      %v313 = vpop.f32.mrf.mxu0
      %v314 = vadd.f32 %v267, %v313
      %315 = vmatmul.f32.gmra.mxu0 %v243
      %v316 = vpop.f32.mrf.mxu0
      %v317 = vadd.f32 %v267, %v316
      %318 = vmatmul.f32.gmra.mxu0 %v244
      %v319 = vpop.f32.mrf.mxu0
      %v320 = vadd.f32 %v267, %v319
      %321 = vmatmul.f32.gmra.mxu0 %v245
      %v322 = vpop.f32.mrf.mxu0
      %v323 = vadd.f32 %v267, %v322
      %324 = vmatmul.f32.gmra.mxu0 %v246
      %v325 = vpop.f32.mrf.mxu0
      %v326 = vadd.f32 %v267, %v325
      %327 = vmatmul.f32.gmra.mxu0 %v247
      %v328 = vpop.f32.mrf.mxu0
      %v329 = vadd.f32 %v267, %v328
      %330 = vmatmul.f32.gmra.mxu0 %v248
      %v331 = vpop.f32.mrf.mxu0
      %v332 = vadd.f32 %v267, %v331
      %333 = vdwg.mxu0
      %334 = vst [vmem:[#allocation9] sm:$0xff] %v287
      %335 = vst [vmem:[#allocation9 + $0x8] sm:$0xff] %v290
      %336 = vst [vmem:[#allocation9 + $0x10] sm:$0xff] %v293
      %337 = vst [vmem:[#allocation9 + $0x18] sm:$0xff] %v296
      %338 = vst [vmem:[#allocation9 + $0x20] sm:$0xff] %v299
      %339 = vst [vmem:[#allocation9 + $0x28] sm:$0xff] %v302
      %340 = vst [vmem:[#allocation9 + $0x30] sm:$0xff] %v305
      %341 = vst [vmem:[#allocation9 + $0x38] sm:$0xff] %v308
      %342 = vst [vmem:[#allocation9 + $0x40] sm:$0xff] %v311
      %343 = vst [vmem:[#allocation9 + $0x48] sm:$0xff] %v314
      %344 = vst [vmem:[#allocation9 + $0x50] sm:$0xff] %v317
      %345 = vst [vmem:[#allocation9 + $0x58] sm:$0xff] %v320
      %346 = vst [vmem:[#allocation9 + $0x60] sm:$0xff] %v323
      %347 = vst [vmem:[#allocation9 + $0x68] sm:$0xff] %v326
      %348 = vst [vmem:[#allocation9 + $0x70] sm:$0xff] %v329
      %349 = vst [vmem:[#allocation9 + $0x78] sm:$0xff] %v332
    $region37: #{tpu_custom_call.1} parent=1 // pred_fallthru
      _
    // Predicated region
    $region38: #{tpu_custom_call.1} parent=1 // pred_check
      _
    $region39: #{tpu_custom_call.1} parent=1 // pred_check_branch
      %351 = sbr.rel (0) target = $region41
    $region40: #{tpu_custom_call.1} parent=1 // pred_region
      %353 = vsyncadd [#allocation5], 0
      %s354 = sshll.u32 [#allocation9], 4
      %s355 = int_to_ptr.vmem [resolvable:$true] %s354
      %s356 = sshll.u32 %s4, 4
      %s357 = int_to_ptr.hbm [resolvable:$true] %s356
      %362 = dma.vmem_to_hbm [thread:$0]  %s355, 2048, %s357, [#allocation5], 128, 128, 8
    $region41: #{tpu_custom_call.1} parent=1 // pred_fallthru
      _
    // Predicated region
    $region42: #{tpu_custom_call.1} parent=1 // pred_check
      _
    $region43: #{tpu_custom_call.1} parent=1 // pred_check_branch
      %364 = sbr.rel (0) target = $region45
    $region44: #{tpu_custom_call.1} parent=1 // pred_region
      %366 = dma.done [#allocation5], 2048
    $region45: #{tpu_custom_call.1} parent=1 // pred_fallthru
      _
    %367 = vsyncpa [#allocation4], 1
    %368 = vsyncpa [#allocation7], 1
    %369 = vsyncpa [#allocation5], 1

</llo_original>
